<compile_context>
chip_gen: v7x
topology: tpu7x:2x2x1
jax: 0.10.0
libtpu: 0.0.40
codegen_flags: <defaults>
</compile_context>

<pallas_src>
import math

import jax
import jax.numpy as jnp
from jax.experimental import pallas as pl
from jax.experimental.pallas import tpu as pltpu


def _round_up(x, m):
    return ((x + m - 1) // m) * m


def _sublane_multiple(dtype):
    # Sub-32-bit dtypes pack along sublanes: one bf16 vreg is [16,128], int8/fp8 [32,128].
    return {4: 8, 2: 16, 1: 32}.get(jnp.dtype(dtype).itemsize, 8)


def _vmem_limit_bytes(required_bytes):
    cap = 128 << 20
    try:
        info = pltpu.get_tpu_info()
        cap = int(getattr(info, "vmem_capacity_bytes", cap))
    except Exception:
        pass
    # Leave compiler headroom (matters on v7x, where physical VMEM is 64 MiB).
    return int(min(max(required_bytes, 32 << 20), int(cap * 0.85)))


# ------------------------------------------------------------------ kernels --

def _linear_kernel_f32(x_ref, w_ref, b_ref, o_ref):
    """f32 output: accumulate directly into the K-resident output block."""
    k = pl.program_id(2)

    @pl.when(k == 0)
    def _():
        o_ref[...] = jnp.broadcast_to(b_ref[...].astype(o_ref.dtype), o_ref.shape)

    o_ref[...] += jnp.dot(x_ref[...], w_ref[...], preferred_element_type=jnp.float32)


def _linear_kernel_acc(x_ref, w_ref, b_ref, o_ref, acc_ref):
    """Non-f32 output: f32 VMEM accumulator, single cast+store at k == last."""
    k = pl.program_id(2)

    @pl.when(k == 0)
    def _():
        acc_ref[...] = jnp.broadcast_to(b_ref[...].astype(jnp.float32), acc_ref.shape)

    acc_ref[...] += jnp.dot(x_ref[...], w_ref[...], preferred_element_type=jnp.float32)

    @pl.when(k == pl.num_programs(2) - 1)
    def _():
        o_ref[...] = acc_ref[...].astype(o_ref.dtype)


# ----------------------------------------------------------------- wrappers --

def prepare_decoder_linear_params(weight, bias, *, tn=1024, tk=1024):
    """Pad + transpose the parameters ONCE (hoist out of the per-call path).

    weight: [N, K] (PyTorch nn.Linear layout), bias: [N].
    Returns (w_kn, b_row, meta): w_kn is [K_pad, N_pad] (lane-dense on N),
    b_row is [1, N_pad], meta carries the logical dims and tile sizes.
    """
    N, K = weight.shape
    N_pad = _round_up(N, 128)
    tn_eff = min(tn, N_pad)
    N_pad = _round_up(N_pad, tn_eff)

    K_pad = _round_up(K, 128)
    tk_eff = min(tk, K_pad)
    K_pad = _round_up(K_pad, tk_eff)

    w = weight
    if (N_pad != N) or (K_pad != K):
        w = jnp.pad(w, ((0, N_pad - N), (0, K_pad - K)))
    w_kn = jnp.transpose(w)                      # [K_pad, N_pad], one-time HBM copy

    b = bias if N_pad == N else jnp.pad(bias, (0, N_pad - N))
    b_row = b.reshape(1, N_pad)

    return w_kn, b_row, dict(N=N, K=K, tn=tn_eff, tk=tk_eff)


def decoder_linear_prepared(embedding, w_kn, b_row, meta, *, tm=512):
    """embedding: [..., K]; w_kn: [K_pad, N_pad]; b_row: [1, N_pad] -> [..., N]."""
    N, K, tn_eff, tk_eff = meta["N"], meta["K"], meta["tn"], meta["tk"]
    K_pad, N_pad = w_kn.shape
    out_dtype = embedding.dtype

    x = embedding.reshape(-1, K)
    M = x.shape[0]
    if K_pad != K:
        # Zero-pad K only (required for reduction correctness). M stays ragged:
        # the overhanging last M block is masked by Pallas and its rows are
        # never part of the valid output.
        x = jnp.pad(x, ((0, 0), (0, K_pad - K)))

    tm_eff = min(tm, _round_up(M, _sublane_multiple(x.dtype)))
    grid_m = pl.cdiv(M, tm_eff)
    grid_n = N_pad // tn_eff

    # If both parallel axes collapse to a single tile, split N so v7x's second
    # TensorCore gets work (small-M decode with one wide N tile).
    if grid_m * grid_n == 1 and N_pad >= 256:
        half = N_pad // 2
        if half % 128 == 0:
            tn_eff = half
            grid_n = 2

    grid_k = K_pad // tk_eff
    grid = (grid_m, grid_n, grid_k)

    needs_acc = out_dtype != jnp.float32
    kernel = _linear_kernel_acc if needs_acc else _linear_kernel_f32
    scratch = [pltpu.VMEM((tm_eff, tn_eff), jnp.float32)] if needs_acc else []

    x_item = jnp.dtype(x.dtype).itemsize
    w_item = jnp.dtype(w_kn.dtype).itemsize
    o_item = jnp.dtype(out_dtype).itemsize
    required = (
        2 * (tm_eff * tk_eff * x_item + tk_eff * tn_eff * w_item + tn_eff * w_item)
        + 2 * tm_eff * tn_eff * o_item
        + (tm_eff * tn_eff * 4 if needs_acc else 0)
        + (4 << 20)
    )

    cost = pl.CostEstimate(
        flops=2 * M * K_pad * N_pad,
        transcendentals=0,
        bytes_accessed=(x.size * x_item + w_kn.size * w_item
                        + b_row.size * w_item + M * N_pad * o_item),
    )

    # TODO(synk): sweep pipeline_mode=pl.Buffered(3) on the x / weight specs if
    # a trace shows exposed DMA on the K axis at the larger tile sizes.
    out = pl.pallas_call(
        kernel,
        out_shape=jax.ShapeDtypeStruct((M, N_pad), out_dtype),
        grid_spec=pltpu.PrefetchScalarGridSpec(
            num_scalar_prefetch=0,
            grid=grid,
            in_specs=[
                pl.BlockSpec((tm_eff, tk_eff), lambda i, j, k: (i, k)),   # x  [M, K_pad]
                pl.BlockSpec((tk_eff, tn_eff), lambda i, j, k: (k, j)),   # W^T [K_pad, N_pad]
                pl.BlockSpec((1, tn_eff), lambda i, j, k: (0, j)),        # bias [1, N_pad]
            ],
            out_specs=pl.BlockSpec((tm_eff, tn_eff), lambda i, j, k: (i, j)),
            scratch_shapes=scratch,
        ),
        compiler_params=pltpu.CompilerParams(
            dimension_semantics=("parallel", "parallel", "arbitrary"),
            vmem_limit_bytes=_vmem_limit_bytes(required),
        ),
        cost_estimate=cost,
    )(x, w_kn, b_row)

    return out[:, :N].reshape(*embedding.shape[:-1], N)


_XLA_FALLBACK_FLOPS = 1 << 22   # below ~4 MFLOP a fused XLA dot wins outright


def decoder_linear(embedding, weight, bias, *, tm=512, tn=1024, tk=1024,
                   force_pallas=False):
    """embedding: [..., K]; weight: [N, K]; bias: [N] -> [..., N]."""
    N, K = weight.shape
    M = math.prod(embedding.shape[:-1])
    if not force_pallas and 2 * M * K * N < _XLA_FALLBACK_FLOPS:
        # Tiny decoder head: padding N->128 / K->128 would do ~64x dead MXU work.
        h = embedding.reshape(-1, K) @ weight.T + bias
        return h.reshape(*embedding.shape[:-1], N)
    w_kn, b_row, meta = prepare_decoder_linear_params(weight, bias, tn=tn, tk=tk)
    return decoder_linear_prepared(embedding, w_kn, b_row, meta, tm=tm)


if __name__ == "__main__":
    key = jax.random.PRNGKey(0)
    (k0, k1, k2, k3, k4, k5, k6, k7, k8) = jax.random.split(key, 9)

    def _ref(x, w, b):
        y = jnp.dot(x.astype(jnp.float32).reshape(-1, w.shape[1]),
                    w.astype(jnp.float32).T,
                    precision=jax.lax.Precision.HIGHEST) + b.astype(jnp.float32)
        return y.reshape(*x.shape[:-1], w.shape[0])

    # --- Test 1: the module's canonical small shape (forced through Pallas) ---
    embedding_dim, output_dim, batch, seq = 32, 2, 2, 8
    bound = 1.0 / math.sqrt(embedding_dim)
    w1 = jax.random.uniform(k1, (output_dim, embedding_dim),
                            minval=-bound, maxval=bound, dtype=jnp.float32)
    b1 = jax.random.uniform(k2, (output_dim,),
                            minval=-bound, maxval=bound, dtype=jnp.float32)
    x1 = jax.random.normal(k0, (batch, seq, embedding_dim), dtype=jnp.float32)

    y1 = decoder_linear(x1, w1, b1, force_pallas=True)       # Pallas path
    jax.block_until_ready(y1)
    y1_fb = decoder_linear(x1, w1, b1)                        # tiny-shape XLA fallback
    r1 = _ref(x1, w1, b1)
    assert y1.shape == (batch, seq, output_dim)
    assert jnp.allclose(y1, r1, atol=5e-3, rtol=5e-3)
    assert jnp.allclose(y1_fb, r1, atol=5e-3, rtol=5e-3)

    # --- Test 2: ragged M + multi-tile f32 path (M=300, K=384, N=320) ---
    K2, N2 = 384, 320
    bound2 = 1.0 / math.sqrt(K2)
    w2 = jax.random.uniform(k4, (N2, K2), minval=-bound2, maxval=bound2, dtype=jnp.float32)
    b2 = jax.random.uniform(k5, (N2,), minval=-bound2, maxval=bound2, dtype=jnp.float32)
    x2 = jax.random.normal(k3, (4, 75, K2), dtype=jnp.float32)
    y2 = decoder_linear(x2, w2, b2, tm=128, tn=128, tk=128)
    jax.block_until_ready(y2)
    assert y2.shape == (4, 75, N2)
    assert jnp.allclose(y2, _ref(x2, w2, b2), atol=5e-3, rtol=5e-3)

    # --- Test 3: bf16 path (f32 VMEM accumulator kernel variant) ---
    K3, N3 = 256, 192
    bound3 = 1.0 / math.sqrt(K3)
    w3 = jax.random.uniform(k7, (N3, K3), minval=-bound3, maxval=bound3,
                            dtype=jnp.float32).astype(jnp.bfloat16)
    b3 = jax.random.uniform(k8, (N3,), minval=-bound3, maxval=bound3,
                            dtype=jnp.float32).astype(jnp.bfloat16)
    x3 = jax.random.normal(k6, (2, 32, K3), dtype=jnp.float32).astype(jnp.bfloat16)
    y3 = decoder_linear(x3, w3, b3, tm=128, tn=128, tk=128, force_pallas=True)
    jax.block_until_ready(y3)
    assert y3.shape == (2, 32, N3) and y3.dtype == jnp.bfloat16
    assert jnp.allclose(y3.astype(jnp.float32), _ref(x3, w3, b3), atol=5e-2, rtol=5e-2)

    print("KERNEL_OK")
</pallas_src>

<mosaic_0001>
module attributes {stable_mosaic.version = 11 : i64} {
  func.func @_linear_kernel_f32(%arg0: i32, %arg1: i32, %arg2: i32, %arg3: memref<16x128xf32, #tpu.memory_space<vmem>>, %arg4: memref<128x128xf32, #tpu.memory_space<vmem>>, %arg5: memref<1x128xf32, #tpu.memory_space<vmem>>, %arg6: memref<16x128xf32, #tpu.memory_space<vmem>>) attributes {dimension_semantics = [#tpu.dimension_semantics<parallel>, #tpu.dimension_semantics<parallel>, #tpu.dimension_semantics<arbitrary>], iteration_bounds = array<i64: 1, 1, 1>, scalar_prefetch = 0 : i64, scratch_operands = 0 : i64, tpu.core_type = #tpu.core_type<tc>, window_params = [{transform_indices = @transform_0, window_bounds = array<i64: 16, 128>}, {transform_indices = @transform_1, window_bounds = array<i64: 128, 128>}, {transform_indices = @transform_2, window_bounds = array<i64: 1, 128>}, {transform_indices = @transform_3, window_bounds = array<i64: 16, 128>}]} {
    %c0_i32 = arith.constant 0 : i32
    %0 = arith.cmpi eq, %arg2, %c0_i32 : i32
    %1 = arith.extui %0 : i1 to i32
    %c0_i32_0 = arith.constant 0 : i32
    %2 = arith.cmpi ne, %1, %c0_i32_0 : i32
    scf.if %2 {
      %c0_8 = arith.constant 0 : index
      %c0_9 = arith.constant 0 : index
      %9 = vector.load %arg5[%c0_8, %c0_9] : memref<1x128xf32, #tpu.memory_space<vmem>>, vector<1x128xf32>
      %10 = vector.shape_cast %9 : vector<1x128xf32> to vector<1x128xf32>
      %11 = vector.broadcast %10 : vector<1x128xf32> to vector<16x128xf32>
      %c0_10 = arith.constant 0 : index
      %c0_11 = arith.constant 0 : index
      %12 = vector.load %arg6[%c0_10, %c0_11] : memref<16x128xf32, #tpu.memory_space<vmem>>, vector<16x128xf32>
      tpu.vector_store %arg6[%c0_10, %c0_11], %11 {strides = array<i32>} : memref<16x128xf32, #tpu.memory_space<vmem>>, vector<16x128xf32>,
    } else {
    }
    %c0 = arith.constant 0 : index
    %c0_1 = arith.constant 0 : index
    %3 = vector.load %arg6[%c0, %c0_1] : memref<16x128xf32, #tpu.memory_space<vmem>>, vector<16x128xf32>
    %c0_2 = arith.constant 0 : index
    %c0_3 = arith.constant 0 : index
    %4 = vector.load %arg3[%c0_2, %c0_3] : memref<16x128xf32, #tpu.memory_space<vmem>>, vector<16x128xf32>
    %c0_4 = arith.constant 0 : index
    %c0_5 = arith.constant 0 : index
    %5 = vector.load %arg4[%c0_4, %c0_5] : memref<128x128xf32, #tpu.memory_space<vmem>>, vector<128x128xf32>
    %cst = arith.constant dense<0.000000e+00> : vector<16x128xf32>
    %6 = tpu.matmul %4, %5, %cst {dimension_numbers = #tpu.dot_dimension_numbers<[1], [0], [0], [1], [0, 0, 1, 1], [], []>} : vector<16x128xf32>, vector<128x128xf32>, vector<16x128xf32> -> vector<16x128xf32>
    %7 = arith.addf %3, %6 : vector<16x128xf32>
    %c0_6 = arith.constant 0 : index
    %c0_7 = arith.constant 0 : index
    %8 = vector.load %arg6[%c0_6, %c0_7] : memref<16x128xf32, #tpu.memory_space<vmem>>, vector<16x128xf32>
    tpu.vector_store %arg6[%c0_6, %c0_7], %7 {strides = array<i32>} : memref<16x128xf32, #tpu.memory_space<vmem>>, vector<16x128xf32>,
    return
  }
  func.func @transform_0(%arg0: i32, %arg1: i32, %arg2: i32) -> (i32, i32) {
    %c0_i32 = arith.constant 0 : i32
    return %arg0, %arg2 : i32, i32
  }
  func.func @transform_1(%arg0: i32, %arg1: i32, %arg2: i32) -> (i32, i32) {
    %c0_i32 = arith.constant 0 : i32
    return %arg2, %arg1 : i32, i32
  }
  func.func @transform_2(%arg0: i32, %arg1: i32, %arg2: i32) -> (i32, i32) {
    %c0_i32 = arith.constant 0 : i32
    %c0_i32_0 = arith.constant 0 : i32
    return %c0_i32, %arg1 : i32, i32
  }
  func.func @transform_3(%arg0: i32, %arg1: i32, %arg2: i32) -> (i32, i32) {
    %c0_i32 = arith.constant 0 : i32
    return %arg0, %arg1 : i32, i32
  }
}

</mosaic_0001>

<llo_original>
// kernel: tpu_custom_call.1
$region0: #{tpu_custom_call.1}
  #allocation0 [shape = 'u32[]', space=smem, size = 0x4, offset = 0x4, fixed_abs, tag = 'smem constant byte address 0x4 - core index']
  #allocation1 [shape = 'u32[144,128]{1,0:T(1,128)}', space=vmem, size = 0x12000, scoped, tag = 'internal scratch']
  %s0 = inlined_call_operand.hbm [shape: f32[16,128], index: 0, kind: input, shape index: {}]
  %s1 = inlined_call_operand.hbm [shape: f32[128,128], index: 1, kind: input, shape index: {}]
  %s2 = inlined_call_operand.vmem [shape: f32[1,128], index: 2, kind: input, shape index: {}]
  %s3 = inlined_call_operand.hbm [shape: f32[16,128], index: 3, kind: output, shape index: {}]
  %s4 = sld [smem:[#allocation0]]
  $region34: #{tpu_custom_call.1} parent=0
    _
  %s6 = ssub.s32 1, %s4
  %s7 = scalar_select 0, %s6, %s4
  $region1: #{tpu_custom_call.1} parent=0
    #allocation2 [shape = 'u8[8192]{0}', space=vmem, size = 0x2000, scoped, tag = 'input window, operand 0, single buffered']
    #allocation3 [shape = 's32[1]{0}', space=sflag, size = 0x4, scoped, tag = 'scoped memory for tpu_custom_call.1']
    #allocation4 [shape = 's32[1]{0}', space=sflag, size = 0x4, scoped, tag = 'scoped memory for tpu_custom_call.1']
    #allocation5 [shape = 'u8[65536]{0}', space=vmem, size = 0x10000, scoped, tag = 'input window, operand 1, single buffered']
    #allocation6 [shape = 's32[1]{0}', space=sflag, size = 0x4, scoped, tag = 'scoped memory for tpu_custom_call.1']
    #allocation7 [shape = 'u8[8192]{0}', space=vmem, size = 0x2000, scoped, tag = 'output window, operand 0, single buffered']
    %8 = vsyncpa [#allocation3], 0
    %9 = vsyncpa [#allocation6], 0
    %10 = vsyncpa [#allocation4], 0
    // Predicated region
    $region2: #{tpu_custom_call.1} parent=1 // pred_check
      _
    $region3: #{tpu_custom_call.1} parent=1 // pred_check_branch
      %12 = sbr.rel (0) target = $region5
    $region4: #{tpu_custom_call.1} parent=1 // pred_region
      %s14 = ssub.s32 256, 256
      %15 = vsyncadd [#allocation3], %s14
      %s16 = sshll.u32 [#allocation2], 4
      %s17 = int_to_ptr.vmem [resolvable:$true] %s16
      %22 = dma.hbm_to_vmem [thread:$0]  %s0, 256, %s17, [#allocation3], 128, 128, 8
    $region5: #{tpu_custom_call.1} parent=1 // pred_fallthru
      _
    // Predicated region
    $region6: #{tpu_custom_call.1} parent=1 // pred_check
      _
    $region7: #{tpu_custom_call.1} parent=1 // pred_check_branch
      %24 = sbr.rel (0) target = $region9
    $region8: #{tpu_custom_call.1} parent=1 // pred_region
      %s26 = ssub.s32 2048, 2048
      %27 = vsyncadd [#allocation6], %s26
      %s28 = sshll.u32 [#allocation5], 4
      %s29 = int_to_ptr.vmem [resolvable:$true] %s28
      %34 = dma.hbm_to_vmem [thread:$0]  %s1, 2048, %s29, [#allocation6], 128, 128, 8
    $region9: #{tpu_custom_call.1} parent=1 // pred_fallthru
      _
    // Predicated region
    $region10: #{tpu_custom_call.1} parent=1 // pred_check
      _
    $region11: #{tpu_custom_call.1} parent=1 // pred_check_branch
      %36 = sbr.rel (0) target = $region13
    $region12: #{tpu_custom_call.1} parent=1 // pred_region
      _
    $region13: #{tpu_custom_call.1} parent=1 // pred_fallthru
      _
    // Predicated region
    $region14: #{tpu_custom_call.1} parent=1 // pred_check
      _
    $region15: #{tpu_custom_call.1} parent=1 // pred_check_branch
      %38 = sbr.rel (0) target = $region17
    $region16: #{tpu_custom_call.1} parent=1 // pred_region
      %39 = dma.done [#allocation3], 256
    $region17: #{tpu_custom_call.1} parent=1 // pred_fallthru
      _
    // Predicated region
    $region18: #{tpu_custom_call.1} parent=1 // pred_check
      _
    $region19: #{tpu_custom_call.1} parent=1 // pred_check_branch
      %41 = sbr.rel (0) target = $region21
    $region20: #{tpu_custom_call.1} parent=1 // pred_region
      %42 = dma.done [#allocation6], 2048
    $region21: #{tpu_custom_call.1} parent=1 // pred_fallthru
      _
    %p43 = scmp.eq.s32.totalorder 0, 0
    // Predicated region
    $region22: #{tpu_custom_call.1} parent=1 // pred_check
      %p44 = pneg %p43
    $region23: #{tpu_custom_call.1} parent=1 // pred_check_branch
      %46 = sbr.rel (%p44) target = $region25
    $region24: #{tpu_custom_call.1} parent=1 // pred_region
      %v47 = vld [vmem:[%s2] sm:$0x1]
      %v49 = vlaneseq
      %v50 = vshrl.u32 %v49, 7
      %v51 = vsub.s32 0, %v50
      %v52 = vrot.slane %v47, %v51
      %54 = vst [vmem:[#allocation7] sm:$0xff] %v52
      %55 = vst [vmem:[#allocation7 + $0x8] sm:$0xff] %v52
    $region25: #{tpu_custom_call.1} parent=1 // pred_fallthru
      _
    %v56 = vld [vmem:[#allocation7] sm:$0xff]
    %v57 = vld [vmem:[#allocation7 + $0x8] sm:$0xff]
    %v58 = vld [vmem:[#allocation2] sm:$0xff]
    %v59 = vld [vmem:[#allocation2 + $0x8] sm:$0xff]
    %v60 = vld [vmem:[#allocation5] sm:$0xff]
    %v61 = vld [vmem:[#allocation5 + $0x8] sm:$0xff]
    %v62 = vld [vmem:[#allocation5 + $0x10] sm:$0xff]
    %v63 = vld [vmem:[#allocation5 + $0x18] sm:$0xff]
    %v64 = vld [vmem:[#allocation5 + $0x20] sm:$0xff]
    %v65 = vld [vmem:[#allocation5 + $0x28] sm:$0xff]
    %v66 = vld [vmem:[#allocation5 + $0x30] sm:$0xff]
    %v67 = vld [vmem:[#allocation5 + $0x38] sm:$0xff]
    %v68 = vld [vmem:[#allocation5 + $0x40] sm:$0xff]
    %v69 = vld [vmem:[#allocation5 + $0x48] sm:$0xff]
    %v70 = vld [vmem:[#allocation5 + $0x50] sm:$0xff]
    %v71 = vld [vmem:[#allocation5 + $0x58] sm:$0xff]
    %v72 = vld [vmem:[#allocation5 + $0x60] sm:$0xff]
    %v73 = vld [vmem:[#allocation5 + $0x68] sm:$0xff]
    %v74 = vld [vmem:[#allocation5 + $0x70] sm:$0xff]
    %v75 = vld [vmem:[#allocation5 + $0x78] sm:$0xff]
    %76 = vmatprep.subr.mxu0 0.0
    %77 = vmatpush1.msra.mxu0 %v60
    %78 = vmatprep.subr.mxu0 0.0
    %79 = vmatpush1.msra.mxu0 %v61
    %80 = vmatprep.subr.mxu0 0.0
    %81 = vmatpush1.msra.mxu0 %v62
    %82 = vmatprep.subr.mxu0 0.0
    %83 = vmatpush1.msra.mxu0 %v63
    %84 = vmatprep.subr.mxu0 0.0
    %85 = vmatpush1.msra.mxu0 %v64
    %86 = vmatprep.subr.mxu0 0.0
    %87 = vmatpush1.msra.mxu0 %v65
    %88 = vmatprep.subr.mxu0 0.0
    %89 = vmatpush1.msra.mxu0 %v66
    %90 = vmatprep.subr.mxu0 0.0
    %91 = vmatpush1.msra.mxu0 %v67
    %92 = vmatprep.subr.mxu0 0.0
    %93 = vmatpush1.msra.mxu0 %v68
    %94 = vmatprep.subr.mxu0 0.0
    %95 = vmatpush1.msra.mxu0 %v69
    %96 = vmatprep.subr.mxu0 0.0
    %97 = vmatpush1.msra.mxu0 %v70
    %98 = vmatprep.subr.mxu0 0.0
    %99 = vmatpush1.msra.mxu0 %v71
    %100 = vmatprep.subr.mxu0 0.0
    %101 = vmatpush1.msra.mxu0 %v72
    %102 = vmatprep.subr.mxu0 0.0
    %103 = vmatpush1.msra.mxu0 %v73
    %104 = vmatprep.subr.mxu0 0.0
    %105 = vmatpush1.msra.mxu0 %v74
    %106 = vmatprep.subr.mxu0 0.0
    %107 = vmatpush1.msra.mxu0 %v75
    %108 = vmatprep.subr.mxu0 0.0
    %109 = vmatpush1.msra.mxu0 0.0
    %110 = vmatprep.subr.mxu0 0.0
    %111 = vmatpush1.msra.mxu0 0.0
    %112 = vmatprep.subr.mxu0 0.0
    %113 = vmatpush1.msra.mxu0 0.0
    %114 = vmatprep.subr.mxu0 0.0
    %115 = vmatpush1.msra.mxu0 0.0
    %116 = vmatprep.subr.mxu0 0.0
    %117 = vmatpush1.msra.mxu0 0.0
    %118 = vmatprep.subr.mxu0 0.0
    %119 = vmatpush1.msra.mxu0 0.0
    %120 = vmatprep.subr.mxu0 0.0
    %121 = vmatpush1.msra.mxu0 0.0
    %122 = vmatprep.subr.mxu0 0.0
    %123 = vmatpush1.msra.mxu0 0.0
    %124 = vmatprep.subr.mxu0 0.0
    %125 = vmatpush1.msra.mxu0 0.0
    %126 = vmatprep.subr.mxu0 0.0
    %127 = vmatpush1.msra.mxu0 0.0
    %128 = vmatprep.subr.mxu0 0.0
    %129 = vmatpush1.msra.mxu0 0.0
    %130 = vmatprep.subr.mxu0 0.0
    %131 = vmatpush1.msra.mxu0 0.0
    %132 = vmatprep.subr.mxu0 0.0
    %133 = vmatpush1.msra.mxu0 0.0
    %134 = vmatprep.subr.mxu0 0.0
    %135 = vmatpush1.msra.mxu0 0.0
    %136 = vmatprep.subr.mxu0 0.0
    %137 = vmatpush1.msra.mxu0 0.0
    %138 = vmatprep.subr.mxu0 0.0
    %139 = vmatpush1.msra.mxu0 0.0
    %140 = vmatprep.mubr.f32.mxu0 0.0
    %141 = vmatmul.mubr.f32.gmra.mrb[0].mxu0 %v58
    %v142 = vpop.f32.mrb[0].mxu0
    %v143 = vadd.f32 0.0, %v142
    %v144 = vpop.f32.mrb[0].mxu0
    %145 = vmatprep.mubr.f32.mxu0 0.0
    %146 = vmatmul.mubr.f32.gmra.mrb[0].mxu0 %v59
    %v147 = vpop.f32.mrb[0].mxu0
    %v148 = vadd.f32 0.0, %v147
    %v149 = vpop.f32.mrb[0].mxu0
    %150 = vdwg.mxu0
    %v151 = vadd.f32 %v56, %v143
    %v152 = vadd.f32 %v57, %v148
    %153 = vst [vmem:[#allocation7] sm:$0xff] %v151
    %154 = vst [vmem:[#allocation7 + $0x8] sm:$0xff] %v152
    // Predicated region
    $region26: #{tpu_custom_call.1} parent=1 // pred_check
      _
    $region27: #{tpu_custom_call.1} parent=1 // pred_check_branch
      %156 = sbr.rel (0) target = $region29
    $region28: #{tpu_custom_call.1} parent=1 // pred_region
      %s158 = ssub.s32 256, 256
      %159 = vsyncadd [#allocation4], %s158
      %s160 = sshll.u32 [#allocation7], 4
      %s161 = int_to_ptr.vmem [resolvable:$true] %s160
      %166 = dma.vmem_to_hbm [thread:$0]  %s161, 256, %s3, [#allocation4], 128, 128, 8
    $region29: #{tpu_custom_call.1} parent=1 // pred_fallthru
      _
    // Predicated region
    $region30: #{tpu_custom_call.1} parent=1 // pred_check
      _
    $region31: #{tpu_custom_call.1} parent=1 // pred_check_branch
      %168 = sbr.rel (0) target = $region33
    $region32: #{tpu_custom_call.1} parent=1 // pred_region
      %169 = dma.done [#allocation4], 256
    $region33: #{tpu_custom_call.1} parent=1 // pred_fallthru
      _
    %170 = vsyncpa [#allocation3], 1
    %171 = vsyncpa [#allocation6], 1
    %172 = vsyncpa [#allocation4], 1

</llo_original>
